<compile_context>
chip_gen: v7x
topology: tpu7x:2x2x1
jax: 0.10.0
libtpu: 0.0.40
codegen_flags: <defaults>
</compile_context>

<pallas_src>
import functools

import jax
import jax.numpy as jnp
import numpy as np
from jax.experimental import pallas as pl
from jax.experimental.pallas import tpu as pltpu


def _round_up(n, m):
    return ((n + m - 1) // m) * m


def _lstm_kernel(x_ref, w_ref, out_ref, *, H, off_hh, off_b, off_bout, off_wout):
    """Single-invocation LSTM forward + output projection + time-axis softmax.

    x_ref:   (T, F) input features.
    w_ref:   packed constants (rows: W_ih^T | W_hh^T | gate bias | out bias |
             W_out^T), lane-dense width L, gate columns pre-scaled for the
             tanh-only sigmoid trick.
    out_ref: (T+2, L): rows 0..T-1 = softmaxed command (padded lanes), row T =
             h_n, row T+1 = c_n (zero-padded lanes).
    """
    T, F = x_ref.shape
    L = w_ref.shape[1]

    # Static slices of the packed weights (all big slices are 8-row aligned).
    wih_t = w_ref[0:F, :]                         # (F, L)
    whh_t = w_ref[off_hh:off_hh + H, :]           # (H, L)
    b = w_ref[off_b:off_b + 1, :]                 # (1, L)
    bout = w_ref[off_bout:off_bout + 1, :]        # (1, L)
    wout_t = w_ref[off_wout:off_wout + H, :]      # (H, L)

    # Hoisted input projection + bias (off the serial chain): one MXU push.
    gates_x = jnp.dot(x_ref[...], wih_t,
                      preferred_element_type=jnp.float32) + b   # (T, L)

    # h0/c0 are identically zero in the module (init_hidden) -> build in-vreg.
    h = jnp.zeros((1, H), jnp.float32)
    c = jnp.zeros((1, H), jnp.float32)
    hs = []

    # Fully unrolled recurrence (T is compile-time constant).  i/f/o weight
    # columns were pre-scaled by 0.5, so sigmoid(z) = 0.5*tanh(z/2) + 0.5 needs
    # a single tanh over the whole packed gates vreg per step.
    # TODO(synk): MXU-resident W_hh^T (matmul_push_rhs/acc_lhs/pop) or VPU+XLU
    # path for the 1-row matmul on 256-wide-MXU chips; kept jnp.dot here.
    for t in range(T):
        gates = gates_x[t:t + 1, :] + jnp.dot(
            h, whh_t, preferred_element_type=jnp.float32)       # (1, L)
        th = jnp.tanh(gates)                                    # 1 EUP push
        i_g = 0.5 * th[:, 0 * H:1 * H] + 0.5
        f_g = 0.5 * th[:, 1 * H:2 * H] + 0.5
        g_g = th[:, 2 * H:3 * H]
        o_g = 0.5 * th[:, 3 * H:4 * H] + 0.5
        c = f_g * c + i_g * g_g
        h = o_g * jnp.tanh(c)
        hs.append(h)

    # hidden2command on every timestep (lane-dense; real cols sliced outside),
    # then legacy F.softmax over the TIME axis (dim 0).
    h_all = jnp.concatenate(hs, axis=0)                         # (T, H)
    logits = jnp.dot(h_all, wout_t,
                     preferred_element_type=jnp.float32) + bout  # (T, L)
    m = jnp.max(logits, axis=0, keepdims=True)
    e = jnp.exp(logits - m)
    cmd = e / jnp.sum(e, axis=0, keepdims=True)                 # (T, L)

    # Merge h_n / c_n into the single lane-dense output.
    hc = jnp.concatenate([h, c], axis=0)                        # (2, H)
    hc = jnp.concatenate([hc, jnp.zeros((2, L - H), jnp.float32)], axis=1)
    out_ref[...] = jnp.concatenate([cmd, hc], axis=0)           # (T+2, L)


def prepare_params(params):
    """One-time (non-jitted, numpy) packing of all constant operands into a
    single lane-dense array + static layout metadata."""
    w_ih = np.asarray(params["w_ih"], np.float32)    # (4H, F)
    w_hh = np.asarray(params["w_hh"], np.float32)    # (4H, H)
    b_ih = np.asarray(params["b_ih"], np.float32)    # (4H,)
    b_hh = np.asarray(params["b_hh"], np.float32)    # (4H,)
    w_out = np.asarray(params["w_out"], np.float32)  # (O, H)
    b_out = np.asarray(params["b_out"], np.float32)  # (O,)
    H = w_hh.shape[1]
    F = w_ih.shape[1]
    O = w_out.shape[0]

    # sigmoid(z) = 0.5*tanh(z/2)+0.5 -> pre-scale i/f/o gate columns by 0.5.
    scale = np.ones((4 * H,), np.float32)
    scale[0 * H:2 * H] = 0.5                          # i, f
    scale[3 * H:4 * H] = 0.5                          # o (g stays unscaled)

    wih_t = w_ih.T * scale                            # (F, 4H)
    whh_t = w_hh.T * scale                            # (H, 4H)
    b = (b_ih + b_hh) * scale                         # (4H,)

    L = max(_round_up(4 * H, 128), _round_up(O, 128))  # lane-dense width
    off_hh = _round_up(F, 8)
    off_b = off_hh + _round_up(H, 8)
    off_bout = off_b + 1
    off_wout = _round_up(off_bout + 1, 8)
    rows = _round_up(off_wout + H, 8)

    wpack = np.zeros((rows, L), np.float32)
    wpack[0:F, 0:4 * H] = wih_t
    wpack[off_hh:off_hh + H, 0:4 * H] = whh_t
    wpack[off_b, 0:4 * H] = b
    wpack[off_bout, 0:O] = b_out
    wpack[off_wout:off_wout + H, 0:O] = w_out.T

    meta = dict(H=H, F=F, O=O, L=L, off_hh=off_hh, off_b=off_b,
                off_bout=off_bout, off_wout=off_wout)
    return jnp.asarray(wpack), meta


def make_lstm_forward(meta):
    """Build a jitted forward bound to the static packed-weight layout."""
    H, O, L = meta["H"], meta["O"], meta["L"]
    kernel = functools.partial(
        _lstm_kernel, H=H, off_hh=meta["off_hh"], off_b=meta["off_b"],
        off_bout=meta["off_bout"], off_wout=meta["off_wout"])

    @jax.jit
    def forward(features, wpack):
        T, B, F = features.shape
        assert B == 1, "module's init_hidden fixes batch=1"
        x2d = features.reshape(T, F).astype(jnp.float32)
        vmem = pl.BlockSpec(memory_space=pltpu.MemorySpace.VMEM)
        out = pl.pallas_call(
            kernel,
            out_shape=jax.ShapeDtypeStruct((T + 2, L), jnp.float32),
            in_specs=[vmem, vmem],
            out_specs=vmem,
        )(x2d, wpack)
        command = out[:T, :O].reshape(T, 1, O)
        h_n = out[T, :H].reshape(1, 1, H)
        c_n = out[T + 1, :H].reshape(1, 1, H)
        return command, (h_n, c_n)

    return forward


def _reference_forward(features, params):
    """Pure-JAX reference of the same forward pass (for verification)."""
    w_ih, w_hh, b_ih, b_hh, w_out, b_out = (
        params["w_ih"], params["w_hh"], params["b_ih"], params["b_hh"],
        params["w_out"], params["b_out"])
    T, B, F = features.shape
    H = w_hh.shape[1]

    def step(carry, x_t):
        h, c = carry
        gates = x_t @ w_ih.T + h @ w_hh.T + b_ih + b_hh
        i = jax.nn.sigmoid(gates[:, 0 * H:1 * H])
        f = jax.nn.sigmoid(gates[:, 1 * H:2 * H])
        g = jnp.tanh(gates[:, 2 * H:3 * H])
        o = jax.nn.sigmoid(gates[:, 3 * H:4 * H])
        c = f * c + i * g
        h = o * jnp.tanh(c)
        return (h, c), h

    h0 = jnp.zeros((1, H), jnp.float32)
    c0 = jnp.zeros((1, H), jnp.float32)
    (hn, cn), hs = jax.lax.scan(step, (h0, c0), features.reshape(T, B, F))
    logits = hs.reshape(T, H) @ w_out.T + b_out          # (T, O)
    cmd = jax.nn.softmax(logits, axis=0)                 # legacy F.softmax dim=0
    return cmd.reshape(T, 1, -1), (hn.reshape(1, 1, H), cn.reshape(1, 1, H))


def init_params(key, n_features, hidden_dim, n_output):
    """Deterministic PyTorch-like uniform(-1/sqrt(H), 1/sqrt(H)) init."""
    ks = jax.random.split(key, 6)
    s = 1.0 / np.sqrt(hidden_dim)
    u = lambda k, shp: jax.random.uniform(k, shp, jnp.float32, -s, s)
    return {
        "w_ih": u(ks[0], (4 * hidden_dim, n_features)),
        "w_hh": u(ks[1], (4 * hidden_dim, hidden_dim)),
        "b_ih": u(ks[2], (4 * hidden_dim,)),
        "b_hh": u(ks[3], (4 * hidden_dim,)),
        "w_out": u(ks[4], (n_output, hidden_dim)),
        "b_out": u(ks[5], (n_output,)),
    }


if __name__ == "__main__":
    T, n_features, hidden_dim, n_output = 8, 8, 32, 4

    key = jax.random.PRNGKey(0)
    k_x, k_p = jax.random.split(key)
    features = jax.random.normal(k_x, (T, 1, n_features), jnp.float32)
    params = init_params(k_p, n_features, hidden_dim, n_output)

    # One-time parameter packing (outside the jitted path) + jitted forward.
    wpack, meta = prepare_params(params)
    lstm_forward = make_lstm_forward(meta)

    command, (h_n, c_n) = lstm_forward(features, wpack)
    command = jax.block_until_ready(command)
    h_n = jax.block_until_ready(h_n)
    c_n = jax.block_until_ready(c_n)

    ref_cmd, (ref_h, ref_c) = _reference_forward(features, params)
    np.testing.assert_allclose(np.asarray(command), np.asarray(ref_cmd),
                               rtol=1e-5, atol=1e-5)
    np.testing.assert_allclose(np.asarray(h_n), np.asarray(ref_h),
                               rtol=1e-5, atol=1e-5)
    np.testing.assert_allclose(np.asarray(c_n), np.asarray(ref_c),
                               rtol=1e-5, atol=1e-5)

    assert command.shape == (T, 1, n_output)
    print("KERNEL_OK")
</pallas_src>

<mosaic_0001>
module attributes {stable_mosaic.version = 11 : i64} {
  func.func @_lstm_kernel(%arg0: memref<8x8xf32, #tpu.memory_space<vmem>>, %arg1: memref<80x128xf32, #tpu.memory_space<vmem>>, %arg2: memref<10x128xf32, #tpu.memory_space<vmem>>) attributes {dimension_semantics = [], scalar_prefetch = 0 : i64, scratch_operands = 0 : i64, tpu.core_type = #tpu.core_type<tc>} {
    %c0 = arith.constant 0 : index
    %c0_0 = arith.constant 0 : index
    %0 = vector.load %arg1[%c0, %c0_0] : memref<80x128xf32, #tpu.memory_space<vmem>>, vector<8x128xf32>
    %c8 = arith.constant 8 : index
    %c0_1 = arith.constant 0 : index
    %1 = vector.load %arg1[%c8, %c0_1] : memref<80x128xf32, #tpu.memory_space<vmem>>, vector<32x128xf32>
    %c40 = arith.constant 40 : index
    %c0_2 = arith.constant 0 : index
    %2 = vector.load %arg1[%c40, %c0_2] : memref<80x128xf32, #tpu.memory_space<vmem>>, vector<1x128xf32>
    %c41 = arith.constant 41 : index
    %c0_3 = arith.constant 0 : index
    %3 = vector.load %arg1[%c41, %c0_3] : memref<80x128xf32, #tpu.memory_space<vmem>>, vector<1x128xf32>
    %c48 = arith.constant 48 : index
    %c0_4 = arith.constant 0 : index
    %4 = vector.load %arg1[%c48, %c0_4] : memref<80x128xf32, #tpu.memory_space<vmem>>, vector<32x128xf32>
    %c0_5 = arith.constant 0 : index
    %c0_6 = arith.constant 0 : index
    %5 = vector.load %arg0[%c0_5, %c0_6] : memref<8x8xf32, #tpu.memory_space<vmem>>, vector<8x8xf32>
    %cst = arith.constant dense<0.000000e+00> : vector<8x128xf32>
    %6 = tpu.matmul %5, %0, %cst {dimension_numbers = #tpu.dot_dimension_numbers<[1], [0], [0], [1], [0, 0, 1, 1], [], []>} : vector<8x8xf32>, vector<8x128xf32>, vector<8x128xf32> -> vector<8x128xf32>
    %7 = vector.broadcast %2 : vector<1x128xf32> to vector<8x128xf32>
    %8 = arith.addf %6, %7 : vector<8x128xf32>
    %cst_7 = arith.constant 0.000000e+00 : f32
    %9 = vector.broadcast %cst_7 : f32 to vector<1x32xf32>
    %cst_8 = arith.constant 0.000000e+00 : f32
    %10 = vector.broadcast %cst_8 : f32 to vector<1x32xf32>
    %11 = vector.extract_strided_slice %8 {offsets = [0, 0], sizes = [1, 128], strides = [1, 1]} : vector<8x128xf32> to vector<1x128xf32>
    %cst_9 = arith.constant dense<0.000000e+00> : vector<1x128xf32>
    %12 = tpu.matmul %9, %1, %cst_9 {dimension_numbers = #tpu.dot_dimension_numbers<[1], [0], [0], [1], [0, 0, 1, 1], [], []>} : vector<1x32xf32>, vector<32x128xf32>, vector<1x128xf32> -> vector<1x128xf32>
    %13 = arith.addf %11, %12 : vector<1x128xf32>
    %14 = math.tanh %13 : vector<1x128xf32>
    %15 = vector.extract_strided_slice %14 {offsets = [0, 0], sizes = [1, 32], strides = [1, 1]} : vector<1x128xf32> to vector<1x32xf32>
    %cst_10 = arith.constant 5.000000e-01 : f32
    %16 = vector.broadcast %cst_10 : f32 to vector<1x32xf32>
    %17 = arith.mulf %16, %15 : vector<1x32xf32>
    %cst_11 = arith.constant 5.000000e-01 : f32
    %18 = vector.broadcast %cst_11 : f32 to vector<1x32xf32>
    %19 = arith.addf %17, %18 : vector<1x32xf32>
    %20 = vector.extract_strided_slice %14 {offsets = [0, 32], sizes = [1, 32], strides = [1, 1]} : vector<1x128xf32> to vector<1x32xf32>
    %cst_12 = arith.constant 5.000000e-01 : f32
    %21 = vector.broadcast %cst_12 : f32 to vector<1x32xf32>
    %22 = arith.mulf %21, %20 : vector<1x32xf32>
    %cst_13 = arith.constant 5.000000e-01 : f32
    %23 = vector.broadcast %cst_13 : f32 to vector<1x32xf32>
    %24 = arith.addf %22, %23 : vector<1x32xf32>
    %25 = vector.extract_strided_slice %14 {offsets = [0, 64], sizes = [1, 32], strides = [1, 1]} : vector<1x128xf32> to vector<1x32xf32>
    %26 = vector.extract_strided_slice %14 {offsets = [0, 96], sizes = [1, 32], strides = [1, 1]} : vector<1x128xf32> to vector<1x32xf32>
    %cst_14 = arith.constant 5.000000e-01 : f32
    %27 = vector.broadcast %cst_14 : f32 to vector<1x32xf32>
    %28 = arith.mulf %27, %26 : vector<1x32xf32>
    %cst_15 = arith.constant 5.000000e-01 : f32
    %29 = vector.broadcast %cst_15 : f32 to vector<1x32xf32>
    %30 = arith.addf %28, %29 : vector<1x32xf32>
    %31 = arith.mulf %24, %10 : vector<1x32xf32>
    %32 = arith.mulf %19, %25 : vector<1x32xf32>
    %33 = arith.addf %31, %32 : vector<1x32xf32>
    %34 = math.tanh %33 : vector<1x32xf32>
    %35 = arith.mulf %30, %34 : vector<1x32xf32>
    %36 = vector.extract_strided_slice %8 {offsets = [1, 0], sizes = [1, 128], strides = [1, 1]} : vector<8x128xf32> to vector<1x128xf32>
    %cst_16 = arith.constant dense<0.000000e+00> : vector<1x128xf32>
    %37 = tpu.matmul %35, %1, %cst_16 {dimension_numbers = #tpu.dot_dimension_numbers<[1], [0], [0], [1], [0, 0, 1, 1], [], []>} : vector<1x32xf32>, vector<32x128xf32>, vector<1x128xf32> -> vector<1x128xf32>
    %38 = arith.addf %36, %37 : vector<1x128xf32>
    %39 = math.tanh %38 : vector<1x128xf32>
    %40 = vector.extract_strided_slice %39 {offsets = [0, 0], sizes = [1, 32], strides = [1, 1]} : vector<1x128xf32> to vector<1x32xf32>
    %cst_17 = arith.constant 5.000000e-01 : f32
    %41 = vector.broadcast %cst_17 : f32 to vector<1x32xf32>
    %42 = arith.mulf %41, %40 : vector<1x32xf32>
    %cst_18 = arith.constant 5.000000e-01 : f32
    %43 = vector.broadcast %cst_18 : f32 to vector<1x32xf32>
    %44 = arith.addf %42, %43 : vector<1x32xf32>
    %45 = vector.extract_strided_slice %39 {offsets = [0, 32], sizes = [1, 32], strides = [1, 1]} : vector<1x128xf32> to vector<1x32xf32>
    %cst_19 = arith.constant 5.000000e-01 : f32
    %46 = vector.broadcast %cst_19 : f32 to vector<1x32xf32>
    %47 = arith.mulf %46, %45 : vector<1x32xf32>
    %cst_20 = arith.constant 5.000000e-01 : f32
    %48 = vector.broadcast %cst_20 : f32 to vector<1x32xf32>
    %49 = arith.addf %47, %48 : vector<1x32xf32>
    %50 = vector.extract_strided_slice %39 {offsets = [0, 64], sizes = [1, 32], strides = [1, 1]} : vector<1x128xf32> to vector<1x32xf32>
    %51 = vector.extract_strided_slice %39 {offsets = [0, 96], sizes = [1, 32], strides = [1, 1]} : vector<1x128xf32> to vector<1x32xf32>
    %cst_21 = arith.constant 5.000000e-01 : f32
    %52 = vector.broadcast %cst_21 : f32 to vector<1x32xf32>
    %53 = arith.mulf %52, %51 : vector<1x32xf32>
    %cst_22 = arith.constant 5.000000e-01 : f32
    %54 = vector.broadcast %cst_22 : f32 to vector<1x32xf32>
    %55 = arith.addf %53, %54 : vector<1x32xf32>
    %56 = arith.mulf %49, %33 : vector<1x32xf32>
    %57 = arith.mulf %44, %50 : vector<1x32xf32>
    %58 = arith.addf %56, %57 : vector<1x32xf32>
    %59 = math.tanh %58 : vector<1x32xf32>
    %60 = arith.mulf %55, %59 : vector<1x32xf32>
    %61 = vector.extract_strided_slice %8 {offsets = [2, 0], sizes = [1, 128], strides = [1, 1]} : vector<8x128xf32> to vector<1x128xf32>
    %cst_23 = arith.constant dense<0.000000e+00> : vector<1x128xf32>
    %62 = tpu.matmul %60, %1, %cst_23 {dimension_numbers = #tpu.dot_dimension_numbers<[1], [0], [0], [1], [0, 0, 1, 1], [], []>} : vector<1x32xf32>, vector<32x128xf32>, vector<1x128xf32> -> vector<1x128xf32>
    %63 = arith.addf %61, %62 : vector<1x128xf32>
    %64 = math.tanh %63 : vector<1x128xf32>
    %65 = vector.extract_strided_slice %64 {offsets = [0, 0], sizes = [1, 32], strides = [1, 1]} : vector<1x128xf32> to vector<1x32xf32>
    %cst_24 = arith.constant 5.000000e-01 : f32
    %66 = vector.broadcast %cst_24 : f32 to vector<1x32xf32>
    %67 = arith.mulf %66, %65 : vector<1x32xf32>
    %cst_25 = arith.constant 5.000000e-01 : f32
    %68 = vector.broadcast %cst_25 : f32 to vector<1x32xf32>
    %69 = arith.addf %67, %68 : vector<1x32xf32>
    %70 = vector.extract_strided_slice %64 {offsets = [0, 32], sizes = [1, 32], strides = [1, 1]} : vector<1x128xf32> to vector<1x32xf32>
    %cst_26 = arith.constant 5.000000e-01 : f32
    %71 = vector.broadcast %cst_26 : f32 to vector<1x32xf32>
    %72 = arith.mulf %71, %70 : vector<1x32xf32>
    %cst_27 = arith.constant 5.000000e-01 : f32
    %73 = vector.broadcast %cst_27 : f32 to vector<1x32xf32>
    %74 = arith.addf %72, %73 : vector<1x32xf32>
    %75 = vector.extract_strided_slice %64 {offsets = [0, 64], sizes = [1, 32], strides = [1, 1]} : vector<1x128xf32> to vector<1x32xf32>
    %76 = vector.extract_strided_slice %64 {offsets = [0, 96], sizes = [1, 32], strides = [1, 1]} : vector<1x128xf32> to vector<1x32xf32>
    %cst_28 = arith.constant 5.000000e-01 : f32
    %77 = vector.broadcast %cst_28 : f32 to vector<1x32xf32>
    %78 = arith.mulf %77, %76 : vector<1x32xf32>
    %cst_29 = arith.constant 5.000000e-01 : f32
    %79 = vector.broadcast %cst_29 : f32 to vector<1x32xf32>
    %80 = arith.addf %78, %79 : vector<1x32xf32>
    %81 = arith.mulf %74, %58 : vector<1x32xf32>
    %82 = arith.mulf %69, %75 : vector<1x32xf32>
    %83 = arith.addf %81, %82 : vector<1x32xf32>
    %84 = math.tanh %83 : vector<1x32xf32>
    %85 = arith.mulf %80, %84 : vector<1x32xf32>
    %86 = vector.extract_strided_slice %8 {offsets = [3, 0], sizes = [1, 128], strides = [1, 1]} : vector<8x128xf32> to vector<1x128xf32>
    %cst_30 = arith.constant dense<0.000000e+00> : vector<1x128xf32>
    %87 = tpu.matmul %85, %1, %cst_30 {dimension_numbers = #tpu.dot_dimension_numbers<[1], [0], [0], [1], [0, 0, 1, 1], [], []>} : vector<1x32xf32>, vector<32x128xf32>, vector<1x128xf32> -> vector<1x128xf32>
    %88 = arith.addf %86, %87 : vector<1x128xf32>
    %89 = math.tanh %88 : vector<1x128xf32>
    %90 = vector.extract_strided_slice %89 {offsets = [0, 0], sizes = [1, 32], strides = [1, 1]} : vector<1x128xf32> to vector<1x32xf32>
    %cst_31 = arith.constant 5.000000e-01 : f32
    %91 = vector.broadcast %cst_31 : f32 to vector<1x32xf32>
    %92 = arith.mulf %91, %90 : vector<1x32xf32>
    %cst_32 = arith.constant 5.000000e-01 : f32
    %93 = vector.broadcast %cst_32 : f32 to vector<1x32xf32>
    %94 = arith.addf %92, %93 : vector<1x32xf32>
    %95 = vector.extract_strided_slice %89 {offsets = [0, 32], sizes = [1, 32], strides = [1, 1]} : vector<1x128xf32> to vector<1x32xf32>
    %cst_33 = arith.constant 5.000000e-01 : f32
    %96 = vector.broadcast %cst_33 : f32 to vector<1x32xf32>
    %97 = arith.mulf %96, %95 : vector<1x32xf32>
    %cst_34 = arith.constant 5.000000e-01 : f32
    %98 = vector.broadcast %cst_34 : f32 to vector<1x32xf32>
    %99 = arith.addf %97, %98 : vector<1x32xf32>
    %100 = vector.extract_strided_slice %89 {offsets = [0, 64], sizes = [1, 32], strides = [1, 1]} : vector<1x128xf32> to vector<1x32xf32>
    %101 = vector.extract_strided_slice %89 {offsets = [0, 96], sizes = [1, 32], strides = [1, 1]} : vector<1x128xf32> to vector<1x32xf32>
    %cst_35 = arith.constant 5.000000e-01 : f32
    %102 = vector.broadcast %cst_35 : f32 to vector<1x32xf32>
    %103 = arith.mulf %102, %101 : vector<1x32xf32>
    %cst_36 = arith.constant 5.000000e-01 : f32
    %104 = vector.broadcast %cst_36 : f32 to vector<1x32xf32>
    %105 = arith.addf %103, %104 : vector<1x32xf32>
    %106 = arith.mulf %99, %83 : vector<1x32xf32>
    %107 = arith.mulf %94, %100 : vector<1x32xf32>
    %108 = arith.addf %106, %107 : vector<1x32xf32>
    %109 = math.tanh %108 : vector<1x32xf32>
    %110 = arith.mulf %105, %109 : vector<1x32xf32>
    %111 = vector.extract_strided_slice %8 {offsets = [4, 0], sizes = [1, 128], strides = [1, 1]} : vector<8x128xf32> to vector<1x128xf32>
    %cst_37 = arith.constant dense<0.000000e+00> : vector<1x128xf32>
    %112 = tpu.matmul %110, %1, %cst_37 {dimension_numbers = #tpu.dot_dimension_numbers<[1], [0], [0], [1], [0, 0, 1, 1], [], []>} : vector<1x32xf32>, vector<32x128xf32>, vector<1x128xf32> -> vector<1x128xf32>
    %113 = arith.addf %111, %112 : vector<1x128xf32>
    %114 = math.tanh %113 : vector<1x128xf32>
    %115 = vector.extract_strided_slice %114 {offsets = [0, 0], sizes = [1, 32], strides = [1, 1]} : vector<1x128xf32> to vector<1x32xf32>
    %cst_38 = arith.constant 5.000000e-01 : f32
    %116 = vector.broadcast %cst_38 : f32 to vector<1x32xf32>
    %117 = arith.mulf %116, %115 : vector<1x32xf32>
    %cst_39 = arith.constant 5.000000e-01 : f32
    %118 = vector.broadcast %cst_39 : f32 to vector<1x32xf32>
    %119 = arith.addf %117, %118 : vector<1x32xf32>
    %120 = vector.extract_strided_slice %114 {offsets = [0, 32], sizes = [1, 32], strides = [1, 1]} : vector<1x128xf32> to vector<1x32xf32>
    %cst_40 = arith.constant 5.000000e-01 : f32
    %121 = vector.broadcast %cst_40 : f32 to vector<1x32xf32>
    %122 = arith.mulf %121, %120 : vector<1x32xf32>
    %cst_41 = arith.constant 5.000000e-01 : f32
    %123 = vector.broadcast %cst_41 : f32 to vector<1x32xf32>
    %124 = arith.addf %122, %123 : vector<1x32xf32>
    %125 = vector.extract_strided_slice %114 {offsets = [0, 64], sizes = [1, 32], strides = [1, 1]} : vector<1x128xf32> to vector<1x32xf32>
    %126 = vector.extract_strided_slice %114 {offsets = [0, 96], sizes = [1, 32], strides = [1, 1]} : vector<1x128xf32> to vector<1x32xf32>
    %cst_42 = arith.constant 5.000000e-01 : f32
    %127 = vector.broadcast %cst_42 : f32 to vector<1x32xf32>
    %128 = arith.mulf %127, %126 : vector<1x32xf32>
    %cst_43 = arith.constant 5.000000e-01 : f32
    %129 = vector.broadcast %cst_43 : f32 to vector<1x32xf32>
    %130 = arith.addf %128, %129 : vector<1x32xf32>
    %131 = arith.mulf %124, %108 : vector<1x32xf32>
    %132 = arith.mulf %119, %125 : vector<1x32xf32>
    %133 = arith.addf %131, %132 : vector<1x32xf32>
    %134 = math.tanh %133 : vector<1x32xf32>
    %135 = arith.mulf %130, %134 : vector<1x32xf32>
    %136 = vector.extract_strided_slice %8 {offsets = [5, 0], sizes = [1, 128], strides = [1, 1]} : vector<8x128xf32> to vector<1x128xf32>
    %cst_44 = arith.constant dense<0.000000e+00> : vector<1x128xf32>
    %137 = tpu.matmul %135, %1, %cst_44 {dimension_numbers = #tpu.dot_dimension_numbers<[1], [0], [0], [1], [0, 0, 1, 1], [], []>} : vector<1x32xf32>, vector<32x128xf32>, vector<1x128xf32> -> vector<1x128xf32>
    %138 = arith.addf %136, %137 : vector<1x128xf32>
    %139 = math.tanh %138 : vector<1x128xf32>
    %140 = vector.extract_strided_slice %139 {offsets = [0, 0], sizes = [1, 32], strides = [1, 1]} : vector<1x128xf32> to vector<1x32xf32>
    %cst_45 = arith.constant 5.000000e-01 : f32
    %141 = vector.broadcast %cst_45 : f32 to vector<1x32xf32>
    %142 = arith.mulf %141, %140 : vector<1x32xf32>
    %cst_46 = arith.constant 5.000000e-01 : f32
    %143 = vector.broadcast %cst_46 : f32 to vector<1x32xf32>
    %144 = arith.addf %142, %143 : vector<1x32xf32>
    %145 = vector.extract_strided_slice %139 {offsets = [0, 32], sizes = [1, 32], strides = [1, 1]} : vector<1x128xf32> to vector<1x32xf32>
    %cst_47 = arith.constant 5.000000e-01 : f32
    %146 = vector.broadcast %cst_47 : f32 to vector<1x32xf32>
    %147 = arith.mulf %146, %145 : vector<1x32xf32>
    %cst_48 = arith.constant 5.000000e-01 : f32
    %148 = vector.broadcast %cst_48 : f32 to vector<1x32xf32>
    %149 = arith.addf %147, %148 : vector<1x32xf32>
    %150 = vector.extract_strided_slice %139 {offsets = [0, 64], sizes = [1, 32], strides = [1, 1]} : vector<1x128xf32> to vector<1x32xf32>
    %151 = vector.extract_strided_slice %139 {offsets = [0, 96], sizes = [1, 32], strides = [1, 1]} : vector<1x128xf32> to vector<1x32xf32>
    %cst_49 = arith.constant 5.000000e-01 : f32
    %152 = vector.broadcast %cst_49 : f32 to vector<1x32xf32>
    %153 = arith.mulf %152, %151 : vector<1x32xf32>
    %cst_50 = arith.constant 5.000000e-01 : f32
    %154 = vector.broadcast %cst_50 : f32 to vector<1x32xf32>
    %155 = arith.addf %153, %154 : vector<1x32xf32>
    %156 = arith.mulf %149, %133 : vector<1x32xf32>
    %157 = arith.mulf %144, %150 : vector<1x32xf32>
    %158 = arith.addf %156, %157 : vector<1x32xf32>
    %159 = math.tanh %158 : vector<1x32xf32>
    %160 = arith.mulf %155, %159 : vector<1x32xf32>
    %161 = vector.extract_strided_slice %8 {offsets = [6, 0], sizes = [1, 128], strides = [1, 1]} : vector<8x128xf32> to vector<1x128xf32>
    %cst_51 = arith.constant dense<0.000000e+00> : vector<1x128xf32>
    %162 = tpu.matmul %160, %1, %cst_51 {dimension_numbers = #tpu.dot_dimension_numbers<[1], [0], [0], [1], [0, 0, 1, 1], [], []>} : vector<1x32xf32>, vector<32x128xf32>, vector<1x128xf32> -> vector<1x128xf32>
    %163 = arith.addf %161, %162 : vector<1x128xf32>
    %164 = math.tanh %163 : vector<1x128xf32>
    %165 = vector.extract_strided_slice %164 {offsets = [0, 0], sizes = [1, 32], strides = [1, 1]} : vector<1x128xf32> to vector<1x32xf32>
    %cst_52 = arith.constant 5.000000e-01 : f32
    %166 = vector.broadcast %cst_52 : f32 to vector<1x32xf32>
    %167 = arith.mulf %166, %165 : vector<1x32xf32>
    %cst_53 = arith.constant 5.000000e-01 : f32
    %168 = vector.broadcast %cst_53 : f32 to vector<1x32xf32>
    %169 = arith.addf %167, %168 : vector<1x32xf32>
    %170 = vector.extract_strided_slice %164 {offsets = [0, 32], sizes = [1, 32], strides = [1, 1]} : vector<1x128xf32> to vector<1x32xf32>
    %cst_54 = arith.constant 5.000000e-01 : f32
    %171 = vector.broadcast %cst_54 : f32 to vector<1x32xf32>
    %172 = arith.mulf %171, %170 : vector<1x32xf32>
    %cst_55 = arith.constant 5.000000e-01 : f32
    %173 = vector.broadcast %cst_55 : f32 to vector<1x32xf32>
    %174 = arith.addf %172, %173 : vector<1x32xf32>
    %175 = vector.extract_strided_slice %164 {offsets = [0, 64], sizes = [1, 32], strides = [1, 1]} : vector<1x128xf32> to vector<1x32xf32>
    %176 = vector.extract_strided_slice %164 {offsets = [0, 96], sizes = [1, 32], strides = [1, 1]} : vector<1x128xf32> to vector<1x32xf32>
    %cst_56 = arith.constant 5.000000e-01 : f32
    %177 = vector.broadcast %cst_56 : f32 to vector<1x32xf32>
    %178 = arith.mulf %177, %176 : vector<1x32xf32>
    %cst_57 = arith.constant 5.000000e-01 : f32
    %179 = vector.broadcast %cst_57 : f32 to vector<1x32xf32>
    %180 = arith.addf %178, %179 : vector<1x32xf32>
    %181 = arith.mulf %174, %158 : vector<1x32xf32>
    %182 = arith.mulf %169, %175 : vector<1x32xf32>
    %183 = arith.addf %181, %182 : vector<1x32xf32>
    %184 = math.tanh %183 : vector<1x32xf32>
    %185 = arith.mulf %180, %184 : vector<1x32xf32>
    %186 = vector.extract_strided_slice %8 {offsets = [7, 0], sizes = [1, 128], strides = [1, 1]} : vector<8x128xf32> to vector<1x128xf32>
    %cst_58 = arith.constant dense<0.000000e+00> : vector<1x128xf32>
    %187 = tpu.matmul %185, %1, %cst_58 {dimension_numbers = #tpu.dot_dimension_numbers<[1], [0], [0], [1], [0, 0, 1, 1], [], []>} : vector<1x32xf32>, vector<32x128xf32>, vector<1x128xf32> -> vector<1x128xf32>
    %188 = arith.addf %186, %187 : vector<1x128xf32>
    %189 = math.tanh %188 : vector<1x128xf32>
    %190 = vector.extract_strided_slice %189 {offsets = [0, 0], sizes = [1, 32], strides = [1, 1]} : vector<1x128xf32> to vector<1x32xf32>
    %cst_59 = arith.constant 5.000000e-01 : f32
    %191 = vector.broadcast %cst_59 : f32 to vector<1x32xf32>
    %192 = arith.mulf %191, %190 : vector<1x32xf32>
    %cst_60 = arith.constant 5.000000e-01 : f32
    %193 = vector.broadcast %cst_60 : f32 to vector<1x32xf32>
    %194 = arith.addf %192, %193 : vector<1x32xf32>
    %195 = vector.extract_strided_slice %189 {offsets = [0, 32], sizes = [1, 32], strides = [1, 1]} : vector<1x128xf32> to vector<1x32xf32>
    %cst_61 = arith.constant 5.000000e-01 : f32
    %196 = vector.broadcast %cst_61 : f32 to vector<1x32xf32>
    %197 = arith.mulf %196, %195 : vector<1x32xf32>
    %cst_62 = arith.constant 5.000000e-01 : f32
    %198 = vector.broadcast %cst_62 : f32 to vector<1x32xf32>
    %199 = arith.addf %197, %198 : vector<1x32xf32>
    %200 = vector.extract_strided_slice %189 {offsets = [0, 64], sizes = [1, 32], strides = [1, 1]} : vector<1x128xf32> to vector<1x32xf32>
    %201 = vector.extract_strided_slice %189 {offsets = [0, 96], sizes = [1, 32], strides = [1, 1]} : vector<1x128xf32> to vector<1x32xf32>
    %cst_63 = arith.constant 5.000000e-01 : f32
    %202 = vector.broadcast %cst_63 : f32 to vector<1x32xf32>
    %203 = arith.mulf %202, %201 : vector<1x32xf32>
    %cst_64 = arith.constant 5.000000e-01 : f32
    %204 = vector.broadcast %cst_64 : f32 to vector<1x32xf32>
    %205 = arith.addf %203, %204 : vector<1x32xf32>
    %206 = arith.mulf %199, %183 : vector<1x32xf32>
    %207 = arith.mulf %194, %200 : vector<1x32xf32>
    %208 = arith.addf %206, %207 : vector<1x32xf32>
    %209 = math.tanh %208 : vector<1x32xf32>
    %210 = arith.mulf %205, %209 : vector<1x32xf32>
    %211 = tpu.concatenate %35, %60, %85, %110, %135, %160, %185, %210 in 0 : vector<1x32xf32>, vector<1x32xf32>, vector<1x32xf32>, vector<1x32xf32>, vector<1x32xf32>, vector<1x32xf32>, vector<1x32xf32>, vector<1x32xf32> -> vector<8x32xf32>
    %cst_65 = arith.constant dense<0.000000e+00> : vector<8x128xf32>
    %212 = tpu.matmul %211, %4, %cst_65 {dimension_numbers = #tpu.dot_dimension_numbers<[1], [0], [0], [1], [0, 0, 1, 1], [], []>} : vector<8x32xf32>, vector<32x128xf32>, vector<8x128xf32> -> vector<8x128xf32>
    %213 = vector.broadcast %3 : vector<1x128xf32> to vector<8x128xf32>
    %214 = arith.addf %212, %213 : vector<8x128xf32>
    %cst_66 = arith.constant dense<0xFF800000> : vector<128xf32>
    %215 = vector.multi_reduction <maximumf>, %214, %cst_66 [0] : vector<8x128xf32> to vector<128xf32>
    %216 = vector.shape_cast %215 : vector<128xf32> to vector<1x128xf32>
    %217 = vector.broadcast %216 : vector<1x128xf32> to vector<8x128xf32>
    %218 = arith.subf %214, %217 : vector<8x128xf32>
    %219 = math.exp %218 : vector<8x128xf32>
    %cst_67 = arith.constant dense<0.000000e+00> : vector<128xf32>
    %220 = vector.multi_reduction <add>, %219, %cst_67 [0] : vector<8x128xf32> to vector<128xf32>
    %221 = vector.shape_cast %220 : vector<128xf32> to vector<1x128xf32>
    %222 = vector.broadcast %221 : vector<1x128xf32> to vector<8x128xf32>
    %223 = arith.divf %219, %222 : vector<8x128xf32>
    %224 = tpu.concatenate %210, %208 in 0 : vector<1x32xf32>, vector<1x32xf32> -> vector<2x32xf32>
    %cst_68 = arith.constant 0.000000e+00 : f32
    %225 = vector.broadcast %cst_68 : f32 to vector<2x96xf32>
    %226 = tpu.concatenate %224, %225 in 1 : vector<2x32xf32>, vector<2x96xf32> -> vector<2x128xf32>
    %227 = tpu.concatenate %223, %226 in 0 : vector<8x128xf32>, vector<2x128xf32> -> vector<10x128xf32>
    %c0_69 = arith.constant 0 : index
    %c0_70 = arith.constant 0 : index
    %228 = vector.load %arg2[%c0_69, %c0_70] : memref<10x128xf32, #tpu.memory_space<vmem>>, vector<10x128xf32>
    tpu.vector_store %arg2[%c0_69, %c0_70], %227 {strides = array<i32>} : memref<10x128xf32, #tpu.memory_space<vmem>>, vector<10x128xf32>,
    return
  }
}

</mosaic_0001>

<llo_original>
// kernel: forward.1
$region0: #{forward.1}
  #allocation0 [shape = 'u32[]', space=smem, size = 0x4, offset = 0x4, fixed_abs, tag = 'smem constant byte address 0x4 - core index']
  #allocation1 [shape = 'u32[144,128]{1,0:T(1,128)}', space=vmem, size = 0x12000, scoped, tag = 'internal scratch']
  %s0 = inlined_call_operand.hbm [shape: f32[8,8], index: 0, kind: input, shape index: {}]
  %s1 = inlined_call_operand.hbm [shape: f32[80,128], index: 1, kind: input, shape index: {}]
  %s2 = inlined_call_operand.vmem [shape: f32[10,128], index: 2, kind: output, shape index: {}]
  %s3 = sld [smem:[#allocation0]]
  $region26: #{forward.1} parent=0
    _
  %s5 = ssub.s32 1, %s3
  %s6 = scalar_select 0, %s5, %s3
  $region1: #{forward.1} parent=0
    #allocation2 [shape = 'u8[4096]{0}', space=vmem, size = 0x1000, scoped, tag = 'input window, operand 0, single buffered']
    #allocation3 [shape = 's32[1]{0}', space=sflag, size = 0x4, scoped, tag = 'scoped memory for forward.1']
    #allocation4 [shape = 'u8[40960]{0}', space=vmem, size = 0xa000, scoped, tag = 'input window, operand 1, single buffered']
    #allocation5 [shape = 's32[1]{0}', space=sflag, size = 0x4, scoped, tag = 'scoped memory for forward.1']
    %7 = vsyncpa [#allocation3], 0
    %8 = vsyncpa [#allocation5], 0
    // Predicated region
    $region2: #{forward.1} parent=1 // pred_check
      _
    $region3: #{forward.1} parent=1 // pred_check_branch
      %10 = sbr.rel (0) target = $region5
    $region4: #{forward.1} parent=1 // pred_region
      %s12 = ssub.s32 128, 128
      %13 = vsyncadd [#allocation3], %s12
      %s15 = sshll.u32 [#allocation2], 4
      %s16 = int_to_ptr.vmem [resolvable:$true] %s15
      %18 = dma.hbm_to_vmem [thread:$0]  %s0, 128, %s16, [#allocation3]
    $region5: #{forward.1} parent=1 // pred_fallthru
      _
    // Predicated region
    $region6: #{forward.1} parent=1 // pred_check
      _
    $region7: #{forward.1} parent=1 // pred_check_branch
      %20 = sbr.rel (0) target = $region9
    $region8: #{forward.1} parent=1 // pred_region
      %s22 = ssub.s32 1280, 1280
      %23 = vsyncadd [#allocation5], %s22
      %s24 = sshll.u32 [#allocation4], 4
      %s25 = int_to_ptr.vmem [resolvable:$true] %s24
      %30 = dma.hbm_to_vmem [thread:$0]  %s1, 1280, %s25, [#allocation5], 128, 128, 8
    $region9: #{forward.1} parent=1 // pred_fallthru
      _
    // Predicated region
    $region10: #{forward.1} parent=1 // pred_check
      _
    $region11: #{forward.1} parent=1 // pred_check_branch
      %32 = sbr.rel (0) target = $region13
    $region12: #{forward.1} parent=1 // pred_region
      %33 = dma.done [#allocation3], 128
    $region13: #{forward.1} parent=1 // pred_fallthru
      _
    // Predicated region
    $region14: #{forward.1} parent=1 // pred_check
      _
    $region15: #{forward.1} parent=1 // pred_check_branch
      %35 = sbr.rel (0) target = $region17
    $region16: #{forward.1} parent=1 // pred_region
      %36 = dma.done [#allocation5], 1280
    $region17: #{forward.1} parent=1 // pred_fallthru
      _
    %v37 = vld [vmem:[#allocation4] sm:$0xff]
    %v38 = vld [vmem:[#allocation4 + $0x8] sm:$0xff]
    %v39 = vld [vmem:[#allocation4 + $0x10] sm:$0xff]
    %v40 = vld [vmem:[#allocation4 + $0x18] sm:$0xff]
    %v41 = vld [vmem:[#allocation4 + $0x20] sm:$0xff]
    %v42 = vld [vmem:[#allocation4 + $0x28] sm:$0x1]
    %v43 = vld [vmem:[#allocation4 + $0x29] sm:$0x1]
    %v44 = vld [vmem:[#allocation4 + $0x30] sm:$0xff]
    %v45 = vld [vmem:[#allocation4 + $0x38] sm:$0xff]
    %v46 = vld [vmem:[#allocation4 + $0x40] sm:$0xff]
    %v47 = vld [vmem:[#allocation4 + $0x48] sm:$0xff]
    %v48 = vld [vmem:[#allocation2] sm:$0xff]
    %v49 = vlaneseq
    %v50 = vshrl.u32 %v49, 7
    %v51 = vsub.s32 0, %v50
    %v52 = vrot.slane %v42, %v51
    %vm53 = vcmask 64512
    %v55 = vsel %vm53, %v48, 0
    %57 = vmatprep.subr.mxu0 0.0
    %58 = vmatpush1.msra.mxu0 %v37
    %59 = vmatprep.subr.mxu0 0.0
    %60 = vmatpush1.msra.mxu0 0.0
    %61 = vmatprep.subr.mxu0 0.0
    %62 = vmatpush1.msra.mxu0 0.0
    %63 = vmatprep.subr.mxu0 0.0
    %64 = vmatpush1.msra.mxu0 0.0
    %65 = vmatprep.subr.mxu0 0.0
    %66 = vmatpush1.msra.mxu0 0.0
    %67 = vmatprep.subr.mxu0 0.0
    %68 = vmatpush1.msra.mxu0 0.0
    %69 = vmatprep.subr.mxu0 0.0
    %70 = vmatpush1.msra.mxu0 0.0
    %71 = vmatprep.subr.mxu0 0.0
    %72 = vmatpush1.msra.mxu0 0.0
    %73 = vmatprep.subr.mxu0 0.0
    %74 = vmatpush1.msra.mxu0 0.0
    %75 = vmatprep.subr.mxu0 0.0
    %76 = vmatpush1.msra.mxu0 0.0
    %77 = vmatprep.subr.mxu0 0.0
    %78 = vmatpush1.msra.mxu0 0.0
    %79 = vmatprep.subr.mxu0 0.0
    %80 = vmatpush1.msra.mxu0 0.0
    %81 = vmatprep.subr.mxu0 0.0
    %82 = vmatpush1.msra.mxu0 0.0
    %83 = vmatprep.subr.mxu0 0.0
    %84 = vmatpush1.msra.mxu0 0.0
    %85 = vmatprep.subr.mxu0 0.0
    %86 = vmatpush1.msra.mxu0 0.0
    %87 = vmatprep.subr.mxu0 0.0
    %88 = vmatpush1.msra.mxu0 0.0
    %89 = vmatprep.subr.mxu0 0.0
    %90 = vmatpush1.msra.mxu0 0.0
    %91 = vmatprep.subr.mxu0 0.0
    %92 = vmatpush1.msra.mxu0 0.0
    %93 = vmatprep.subr.mxu0 0.0
    %94 = vmatpush1.msra.mxu0 0.0
    %95 = vmatprep.subr.mxu0 0.0
    %96 = vmatpush1.msra.mxu0 0.0
    %97 = vmatprep.subr.mxu0 0.0
    %98 = vmatpush1.msra.mxu0 0.0
    %99 = vmatprep.subr.mxu0 0.0
    %100 = vmatpush1.msra.mxu0 0.0
    %101 = vmatprep.subr.mxu0 0.0
    %102 = vmatpush1.msra.mxu0 0.0
    %103 = vmatprep.subr.mxu0 0.0
    %104 = vmatpush1.msra.mxu0 0.0
    %105 = vmatprep.subr.mxu0 0.0
    %106 = vmatpush1.msra.mxu0 0.0
    %107 = vmatprep.subr.mxu0 0.0
    %108 = vmatpush1.msra.mxu0 0.0
    %109 = vmatprep.subr.mxu0 0.0
    %110 = vmatpush1.msra.mxu0 0.0
    %111 = vmatprep.subr.mxu0 0.0
    %112 = vmatpush1.msra.mxu0 0.0
    %113 = vmatprep.subr.mxu0 0.0
    %114 = vmatpush1.msra.mxu0 0.0
    %115 = vmatprep.subr.mxu0 0.0
    %116 = vmatpush1.msra.mxu0 0.0
    %117 = vmatprep.subr.mxu0 0.0
    %118 = vmatpush1.msra.mxu0 0.0
    %119 = vmatprep.subr.mxu0 0.0
    %120 = vmatpush1.msra.mxu0 0.0
    %121 = vmatprep.mubr.f32.mxu0 0.0
    %122 = vmatmul.mubr.f32.gmra.mrb[0].mxu0 %v55
    %v123 = vpop.f32.mrb[0].mxu0
    %v124 = vadd.f32 %v52, %v123
    %v125 = vpop.f32.mrb[0].mxu0
    %126 = vdwg.mxu0
    %vm127 = vcmask 261120
    %v129 = vsel %vm127, 0.0, 0
    %131 = vmatprep.subr.mxu0 0.0
    %132 = vmatpush1.msra.mxu0 %v38
    %133 = vmatprep.subr.mxu0 0.0
    %134 = vmatpush1.msra.mxu0 %v39
    %135 = vmatprep.subr.mxu0 0.0
    %136 = vmatpush1.msra.mxu0 %v40
    %137 = vmatprep.subr.mxu0 0.0
    %138 = vmatpush1.msra.mxu0 %v41
    %139 = vmatprep.subr.mxu0 0.0
    %140 = vmatpush1.msra.mxu0 0.0
    %141 = vmatprep.subr.mxu0 0.0
    %142 = vmatpush1.msra.mxu0 0.0
    %143 = vmatprep.subr.mxu0 0.0
    %144 = vmatpush1.msra.mxu0 0.0
    %145 = vmatprep.subr.mxu0 0.0
    %146 = vmatpush1.msra.mxu0 0.0
    %147 = vmatprep.subr.mxu0 0.0
    %148 = vmatpush1.msra.mxu0 0.0
    %149 = vmatprep.subr.mxu0 0.0
    %150 = vmatpush1.msra.mxu0 0.0
    %151 = vmatprep.subr.mxu0 0.0
    %152 = vmatpush1.msra.mxu0 0.0
    %153 = vmatprep.subr.mxu0 0.0
    %154 = vmatpush1.msra.mxu0 0.0
    %155 = vmatprep.subr.mxu0 0.0
    %156 = vmatpush1.msra.mxu0 0.0
    %157 = vmatprep.subr.mxu0 0.0
    %158 = vmatpush1.msra.mxu0 0.0
    %159 = vmatprep.subr.mxu0 0.0
    %160 = vmatpush1.msra.mxu0 0.0
    %161 = vmatprep.subr.mxu0 0.0
    %162 = vmatpush1.msra.mxu0 0.0
    %163 = vmatprep.subr.mxu0 0.0
    %164 = vmatpush1.msra.mxu0 0.0
    %165 = vmatprep.subr.mxu0 0.0
    %166 = vmatpush1.msra.mxu0 0.0
    %167 = vmatprep.subr.mxu0 0.0
    %168 = vmatpush1.msra.mxu0 0.0
    %169 = vmatprep.subr.mxu0 0.0
    %170 = vmatpush1.msra.mxu0 0.0
    %171 = vmatprep.subr.mxu0 0.0
    %172 = vmatpush1.msra.mxu0 0.0
    %173 = vmatprep.subr.mxu0 0.0
    %174 = vmatpush1.msra.mxu0 0.0
    %175 = vmatprep.subr.mxu0 0.0
    %176 = vmatpush1.msra.mxu0 0.0
    %177 = vmatprep.subr.mxu0 0.0
    %178 = vmatpush1.msra.mxu0 0.0
    %179 = vmatprep.subr.mxu0 0.0
    %180 = vmatpush1.msra.mxu0 0.0
    %181 = vmatprep.subr.mxu0 0.0
    %182 = vmatpush1.msra.mxu0 0.0
    %183 = vmatprep.subr.mxu0 0.0
    %184 = vmatpush1.msra.mxu0 0.0
    %185 = vmatprep.subr.mxu0 0.0
    %186 = vmatpush1.msra.mxu0 0.0
    %187 = vmatprep.subr.mxu0 0.0
    %188 = vmatpush1.msra.mxu0 0.0
    %189 = vmatprep.subr.mxu0 0.0
    %190 = vmatpush1.msra.mxu0 0.0
    %191 = vmatprep.subr.mxu0 0.0
    %192 = vmatpush1.msra.mxu0 0.0
    %193 = vmatprep.subr.mxu0 0.0
    %194 = vmatpush1.msra.mxu0 0.0
    %195 = vmatprep.mubr.f32.mxu0 0.0
    %196 = vmatmul.mubr.f32.gmra.mrb[0].mxu0 %v129
    %v197 = vpop.f32.mrb[0].mxu0
    %v198 = vadd.f32 0.0, %v197
    %v199 = vpop.f32.mrb[0].mxu0
    %200 = vdwg.mxu0
    %v201 = vadd.f32 %v124, %v198
    %v202 = vtanh.pop %v201
    %v203 = vmul.f32 %v202, 0.5
    %v204 = vadd.f32 %v203, 0.5
    %v205 = vmul.f32 %v204, 0.0
    %207 = vrot.lane.b32.xlu0 %v202, 64
    %v208 = vpop.permute.xlu0 %207
    %v210 = vmul.f32 %v204, %v208
    %212 = vrot.lane.b32.xlu0 %v210, 32
    %v213 = vpop.permute.xlu0 %212
    %v215 = vadd.f32 %v205, %v213
    %v216 = vtanh.pop %v215
    %218 = vrot.lane.b32.xlu0 %v216, 64
    %v219 = vpop.permute.xlu0 %218
    %v221 = vmul.f32 %v204, %v219
    %223 = vrot.lane.b32.xlu0 %v221, 32
    %v224 = vpop.permute.xlu0 %223
    %v225 = vsel %vm127, %v224, 0
    %227 = vmatprep.subr.mxu0 0.0
    %228 = vmatpush1.msra.mxu0 %v38
    %229 = vmatprep.subr.mxu0 0.0
    %230 = vmatpush1.msra.mxu0 %v39
    %231 = vmatprep.subr.mxu0 0.0
    %232 = vmatpush1.msra.mxu0 %v40
    %233 = vmatprep.subr.mxu0 0.0
    %234 = vmatpush1.msra.mxu0 %v41
    %235 = vmatprep.subr.mxu0 0.0
    %236 = vmatpush1.msra.mxu0 0.0
    %237 = vmatprep.subr.mxu0 0.0
    %238 = vmatpush1.msra.mxu0 0.0
    %239 = vmatprep.subr.mxu0 0.0
    %240 = vmatpush1.msra.mxu0 0.0
    %241 = vmatprep.subr.mxu0 0.0
    %242 = vmatpush1.msra.mxu0 0.0
    %243 = vmatprep.subr.mxu0 0.0
    %244 = vmatpush1.msra.mxu0 0.0
    %245 = vmatprep.subr.mxu0 0.0
    %246 = vmatpush1.msra.mxu0 0.0
    %247 = vmatprep.subr.mxu0 0.0
    %248 = vmatpush1.msra.mxu0 0.0
    %249 = vmatprep.subr.mxu0 0.0
    %250 = vmatpush1.msra.mxu0 0.0
    %251 = vmatprep.subr.mxu0 0.0
    %252 = vmatpush1.msra.mxu0 0.0
    %253 = vmatprep.subr.mxu0 0.0
    %254 = vmatpush1.msra.mxu0 0.0
    %255 = vmatprep.subr.mxu0 0.0
    %256 = vmatpush1.msra.mxu0 0.0
    %257 = vmatprep.subr.mxu0 0.0
    %258 = vmatpush1.msra.mxu0 0.0
    %259 = vmatprep.subr.mxu0 0.0
    %260 = vmatpush1.msra.mxu0 0.0
    %261 = vmatprep.subr.mxu0 0.0
    %262 = vmatpush1.msra.mxu0 0.0
    %263 = vmatprep.subr.mxu0 0.0
    %264 = vmatpush1.msra.mxu0 0.0
    %265 = vmatprep.subr.mxu0 0.0
    %266 = vmatpush1.msra.mxu0 0.0
    %267 = vmatprep.subr.mxu0 0.0
    %268 = vmatpush1.msra.mxu0 0.0
    %269 = vmatprep.subr.mxu0 0.0
    %270 = vmatpush1.msra.mxu0 0.0
    %271 = vmatprep.subr.mxu0 0.0
    %272 = vmatpush1.msra.mxu0 0.0
    %273 = vmatprep.subr.mxu0 0.0
    %274 = vmatpush1.msra.mxu0 0.0
    %275 = vmatprep.subr.mxu0 0.0
    %276 = vmatpush1.msra.mxu0 0.0
    %277 = vmatprep.subr.mxu0 0.0
    %278 = vmatpush1.msra.mxu0 0.0
    %279 = vmatprep.subr.mxu0 0.0
    %280 = vmatpush1.msra.mxu0 0.0
    %281 = vmatprep.subr.mxu0 0.0
    %282 = vmatpush1.msra.mxu0 0.0
    %283 = vmatprep.subr.mxu0 0.0
    %284 = vmatpush1.msra.mxu0 0.0
    %285 = vmatprep.subr.mxu0 0.0
    %286 = vmatpush1.msra.mxu0 0.0
    %287 = vmatprep.subr.mxu0 0.0
    %288 = vmatpush1.msra.mxu0 0.0
    %289 = vmatprep.subr.mxu0 0.0
    %290 = vmatpush1.msra.mxu0 0.0
    %291 = vmatprep.mubr.f32.mxu0 0.0
    %292 = vmatmul.mubr.f32.gmra.mrb[0].mxu0 %v225
    %v293 = vpop.f32.mrb[0].mxu0
    %v294 = vadd.f32 0.0, %v293
    %v295 = vpop.f32.mrb[0].mxu0
    %296 = vdwg.mxu0
    %v298 = vrot.slane %v294, 7
    %v300 = vadd.f32 %v124, %v298
    %v301 = vtanh.pop %v300
    %v302 = vmul.f32 %v301, 0.5
    %v303 = vadd.f32 %v302, 0.5
    %v305 = vrot.slane %v215, 7
    %v307 = vmul.f32 %v303, %v305
    %309 = vrot.lane.b32.xlu0 %v301, 64
    %v310 = vpop.permute.xlu0 %309
    %v312 = vmul.f32 %v303, %v310
    %314 = vrot.lane.b32.xlu0 %v312, 32
    %v315 = vpop.permute.xlu0 %314
    %v317 = vadd.f32 %v307, %v315
    %v318 = vtanh.pop %v317
    %320 = vrot.lane.b32.xlu0 %v318, 64
    %v321 = vpop.permute.xlu0 %320
    %v323 = vmul.f32 %v303, %v321
    %v325 = vrot.slane %v323, 1
    %326 = vrot.lane.b32.xlu0 %v325, 32
    %v327 = vpop.permute.xlu0 %326
    %v328 = vsel %vm127, %v327, 0
    %330 = vmatprep.subr.mxu0 0.0
    %331 = vmatpush1.msra.mxu0 %v38
    %332 = vmatprep.subr.mxu0 0.0
    %333 = vmatpush1.msra.mxu0 %v39
    %334 = vmatprep.subr.mxu0 0.0
    %335 = vmatpush1.msra.mxu0 %v40
    %336 = vmatprep.subr.mxu0 0.0
    %337 = vmatpush1.msra.mxu0 %v41
    %338 = vmatprep.subr.mxu0 0.0
    %339 = vmatpush1.msra.mxu0 0.0
    %340 = vmatprep.subr.mxu0 0.0
    %341 = vmatpush1.msra.mxu0 0.0
    %342 = vmatprep.subr.mxu0 0.0
    %343 = vmatpush1.msra.mxu0 0.0
    %344 = vmatprep.subr.mxu0 0.0
    %345 = vmatpush1.msra.mxu0 0.0
    %346 = vmatprep.subr.mxu0 0.0
    %347 = vmatpush1.msra.mxu0 0.0
    %348 = vmatprep.subr.mxu0 0.0
    %349 = vmatpush1.msra.mxu0 0.0
    %350 = vmatprep.subr.mxu0 0.0
    %351 = vmatpush1.msra.mxu0 0.0
    %352 = vmatprep.subr.mxu0 0.0
    %353 = vmatpush1.msra.mxu0 0.0
    %354 = vmatprep.subr.mxu0 0.0
    %355 = vmatpush1.msra.mxu0 0.0
    %356 = vmatprep.subr.mxu0 0.0
    %357 = vmatpush1.msra.mxu0 0.0
    %358 = vmatprep.subr.mxu0 0.0
    %359 = vmatpush1.msra.mxu0 0.0
    %360 = vmatprep.subr.mxu0 0.0
    %361 = vmatpush1.msra.mxu0 0.0
    %362 = vmatprep.subr.mxu0 0.0
    %363 = vmatpush1.msra.mxu0 0.0
    %364 = vmatprep.subr.mxu0 0.0
    %365 = vmatpush1.msra.mxu0 0.0
    %366 = vmatprep.subr.mxu0 0.0
    %367 = vmatpush1.msra.mxu0 0.0
    %368 = vmatprep.subr.mxu0 0.0
    %369 = vmatpush1.msra.mxu0 0.0
    %370 = vmatprep.subr.mxu0 0.0
    %371 = vmatpush1.msra.mxu0 0.0
    %372 = vmatprep.subr.mxu0 0.0
    %373 = vmatpush1.msra.mxu0 0.0
    %374 = vmatprep.subr.mxu0 0.0
    %375 = vmatpush1.msra.mxu0 0.0
    %376 = vmatprep.subr.mxu0 0.0
    %377 = vmatpush1.msra.mxu0 0.0
    %378 = vmatprep.subr.mxu0 0.0
    %379 = vmatpush1.msra.mxu0 0.0
    %380 = vmatprep.subr.mxu0 0.0
    %381 = vmatpush1.msra.mxu0 0.0
    %382 = vmatprep.subr.mxu0 0.0
    %383 = vmatpush1.msra.mxu0 0.0
    %384 = vmatprep.subr.mxu0 0.0
    %385 = vmatpush1.msra.mxu0 0.0
    %386 = vmatprep.subr.mxu0 0.0
    %387 = vmatpush1.msra.mxu0 0.0
    %388 = vmatprep.subr.mxu0 0.0
    %389 = vmatpush1.msra.mxu0 0.0
    %390 = vmatprep.subr.mxu0 0.0
    %391 = vmatpush1.msra.mxu0 0.0
    %392 = vmatprep.subr.mxu0 0.0
    %393 = vmatpush1.msra.mxu0 0.0
    %394 = vmatprep.mubr.f32.mxu0 0.0
    %395 = vmatmul.mubr.f32.gmra.mrb[0].mxu0 %v328
    %v396 = vpop.f32.mrb[0].mxu0
    %v397 = vadd.f32 0.0, %v396
    %v398 = vpop.f32.mrb[0].mxu0
    %399 = vdwg.mxu0
    %v401 = vrot.slane %v397, 6
    %v403 = vadd.f32 %v124, %v401
    %v404 = vtanh.pop %v403
    %v405 = vmul.f32 %v404, 0.5
    %v406 = vadd.f32 %v405, 0.5
    %v408 = vrot.slane %v317, 7
    %v410 = vmul.f32 %v406, %v408
    %412 = vrot.lane.b32.xlu0 %v404, 64
    %v413 = vpop.permute.xlu0 %412
    %v415 = vmul.f32 %v406, %v413
    %417 = vrot.lane.b32.xlu0 %v415, 32
    %v418 = vpop.permute.xlu0 %417
    %v420 = vadd.f32 %v410, %v418
    %v421 = vtanh.pop %v420
    %423 = vrot.lane.b32.xlu0 %v421, 64
    %v424 = vpop.permute.xlu0 %423
    %v426 = vmul.f32 %v406, %v424
    %v428 = vrot.slane %v426, 2
    %429 = vrot.lane.b32.xlu0 %v428, 32
    %v430 = vpop.permute.xlu0 %429
    %v431 = vsel %vm127, %v430, 0
    %433 = vmatprep.subr.mxu0 0.0
    %434 = vmatpush1.msra.mxu0 %v38
    %435 = vmatprep.subr.mxu0 0.0
    %436 = vmatpush1.msra.mxu0 %v39
    %437 = vmatprep.subr.mxu0 0.0
    %438 = vmatpush1.msra.mxu0 %v40
    %439 = vmatprep.subr.mxu0 0.0
    %440 = vmatpush1.msra.mxu0 %v41
    %441 = vmatprep.subr.mxu0 0.0
    %442 = vmatpush1.msra.mxu0 0.0
    %443 = vmatprep.subr.mxu0 0.0
    %444 = vmatpush1.msra.mxu0 0.0
    %445 = vmatprep.subr.mxu0 0.0
    %446 = vmatpush1.msra.mxu0 0.0
    %447 = vmatprep.subr.mxu0 0.0
    %448 = vmatpush1.msra.mxu0 0.0
    %449 = vmatprep.subr.mxu0 0.0
    %450 = vmatpush1.msra.mxu0 0.0
    %451 = vmatprep.subr.mxu0 0.0
    %452 = vmatpush1.msra.mxu0 0.0
    %453 = vmatprep.subr.mxu0 0.0
    %454 = vmatpush1.msra.mxu0 0.0
    %455 = vmatprep.subr.mxu0 0.0
    %456 = vmatpush1.msra.mxu0 0.0
    %457 = vmatprep.subr.mxu0 0.0
    %458 = vmatpush1.msra.mxu0 0.0
    %459 = vmatprep.subr.mxu0 0.0
    %460 = vmatpush1.msra.mxu0 0.0
    %461 = vmatprep.subr.mxu0 0.0
    %462 = vmatpush1.msra.mxu0 0.0
    %463 = vmatprep.subr.mxu0 0.0
    %464 = vmatpush1.msra.mxu0 0.0
    %465 = vmatprep.subr.mxu0 0.0
    %466 = vmatpush1.msra.mxu0 0.0
    %467 = vmatprep.subr.mxu0 0.0
    %468 = vmatpush1.msra.mxu0 0.0
    %469 = vmatprep.subr.mxu0 0.0
    %470 = vmatpush1.msra.mxu0 0.0
    %471 = vmatprep.subr.mxu0 0.0
    %472 = vmatpush1.msra.mxu0 0.0
    %473 = vmatprep.subr.mxu0 0.0
    %474 = vmatpush1.msra.mxu0 0.0
    %475 = vmatprep.subr.mxu0 0.0
    %476 = vmatpush1.msra.mxu0 0.0
    %477 = vmatprep.subr.mxu0 0.0
    %478 = vmatpush1.msra.mxu0 0.0
    %479 = vmatprep.subr.mxu0 0.0
    %480 = vmatpush1.msra.mxu0 0.0
    %481 = vmatprep.subr.mxu0 0.0
    %482 = vmatpush1.msra.mxu0 0.0
    %483 = vmatprep.subr.mxu0 0.0
    %484 = vmatpush1.msra.mxu0 0.0
    %485 = vmatprep.subr.mxu0 0.0
    %486 = vmatpush1.msra.mxu0 0.0
    %487 = vmatprep.subr.mxu0 0.0
    %488 = vmatpush1.msra.mxu0 0.0
    %489 = vmatprep.subr.mxu0 0.0
    %490 = vmatpush1.msra.mxu0 0.0
    %491 = vmatprep.subr.mxu0 0.0
    %492 = vmatpush1.msra.mxu0 0.0
    %493 = vmatprep.subr.mxu0 0.0
    %494 = vmatpush1.msra.mxu0 0.0
    %495 = vmatprep.subr.mxu0 0.0
    %496 = vmatpush1.msra.mxu0 0.0
    %497 = vmatprep.mubr.f32.mxu0 0.0
    %498 = vmatmul.mubr.f32.gmra.mrb[0].mxu0 %v431
    %v499 = vpop.f32.mrb[0].mxu0
    %v500 = vadd.f32 0.0, %v499
    %v501 = vpop.f32.mrb[0].mxu0
    %502 = vdwg.mxu0
    %v504 = vrot.slane %v500, 5
    %v506 = vadd.f32 %v124, %v504
    %v507 = vtanh.pop %v506
    %v508 = vmul.f32 %v507, 0.5
    %v509 = vadd.f32 %v508, 0.5
    %v511 = vrot.slane %v420, 7
    %v513 = vmul.f32 %v509, %v511
    %515 = vrot.lane.b32.xlu0 %v507, 64
    %v516 = vpop.permute.xlu0 %515
    %v518 = vmul.f32 %v509, %v516
    %520 = vrot.lane.b32.xlu0 %v518, 32
    %v521 = vpop.permute.xlu0 %520
    %v523 = vadd.f32 %v513, %v521
    %v524 = vtanh.pop %v523
    %526 = vrot.lane.b32.xlu0 %v524, 64
    %v527 = vpop.permute.xlu0 %526
    %v529 = vmul.f32 %v509, %v527
    %v531 = vrot.slane %v529, 3
    %532 = vrot.lane.b32.xlu0 %v531, 32
    %v533 = vpop.permute.xlu0 %532
    %v534 = vsel %vm127, %v533, 0
    %536 = vmatprep.subr.mxu0 0.0
    %537 = vmatpush1.msra.mxu0 %v38
    %538 = vmatprep.subr.mxu0 0.0
    %539 = vmatpush1.msra.mxu0 %v39
    %540 = vmatprep.subr.mxu0 0.0
    %541 = vmatpush1.msra.mxu0 %v40
    %542 = vmatprep.subr.mxu0 0.0
    %543 = vmatpush1.msra.mxu0 %v41
    %544 = vmatprep.subr.mxu0 0.0
    %545 = vmatpush1.msra.mxu0 0.0
    %546 = vmatprep.subr.mxu0 0.0
    %547 = vmatpush1.msra.mxu0 0.0
    %548 = vmatprep.subr.mxu0 0.0
    %549 = vmatpush1.msra.mxu0 0.0
    %550 = vmatprep.subr.mxu0 0.0
    %551 = vmatpush1.msra.mxu0 0.0
    %552 = vmatprep.subr.mxu0 0.0
    %553 = vmatpush1.msra.mxu0 0.0
    %554 = vmatprep.subr.mxu0 0.0
    %555 = vmatpush1.msra.mxu0 0.0
    %556 = vmatprep.subr.mxu0 0.0
    %557 = vmatpush1.msra.mxu0 0.0
    %558 = vmatprep.subr.mxu0 0.0
    %559 = vmatpush1.msra.mxu0 0.0
    %560 = vmatprep.subr.mxu0 0.0
    %561 = vmatpush1.msra.mxu0 0.0
    %562 = vmatprep.subr.mxu0 0.0
    %563 = vmatpush1.msra.mxu0 0.0
    %564 = vmatprep.subr.mxu0 0.0
    %565 = vmatpush1.msra.mxu0 0.0
    %566 = vmatprep.subr.mxu0 0.0
    %567 = vmatpush1.msra.mxu0 0.0
    %568 = vmatprep.subr.mxu0 0.0
    %569 = vmatpush1.msra.mxu0 0.0
    %570 = vmatprep.subr.mxu0 0.0
    %571 = vmatpush1.msra.mxu0 0.0
    %572 = vmatprep.subr.mxu0 0.0
    %573 = vmatpush1.msra.mxu0 0.0
    %574 = vmatprep.subr.mxu0 0.0
    %575 = vmatpush1.msra.mxu0 0.0
    %576 = vmatprep.subr.mxu0 0.0
    %577 = vmatpush1.msra.mxu0 0.0
    %578 = vmatprep.subr.mxu0 0.0
    %579 = vmatpush1.msra.mxu0 0.0
    %580 = vmatprep.subr.mxu0 0.0
    %581 = vmatpush1.msra.mxu0 0.0
    %582 = vmatprep.subr.mxu0 0.0
    %583 = vmatpush1.msra.mxu0 0.0
    %584 = vmatprep.subr.mxu0 0.0
    %585 = vmatpush1.msra.mxu0 0.0
    %586 = vmatprep.subr.mxu0 0.0
    %587 = vmatpush1.msra.mxu0 0.0
    %588 = vmatprep.subr.mxu0 0.0
    %589 = vmatpush1.msra.mxu0 0.0
    %590 = vmatprep.subr.mxu0 0.0
    %591 = vmatpush1.msra.mxu0 0.0
    %592 = vmatprep.subr.mxu0 0.0
    %593 = vmatpush1.msra.mxu0 0.0
    %594 = vmatprep.subr.mxu0 0.0
    %595 = vmatpush1.msra.mxu0 0.0
    %596 = vmatprep.subr.mxu0 0.0
    %597 = vmatpush1.msra.mxu0 0.0
    %598 = vmatprep.subr.mxu0 0.0
    %599 = vmatpush1.msra.mxu0 0.0
    %600 = vmatprep.mubr.f32.mxu0 0.0
    %601 = vmatmul.mubr.f32.gmra.mrb[0].mxu0 %v534
    %v602 = vpop.f32.mrb[0].mxu0
    %v603 = vadd.f32 0.0, %v602
    %v604 = vpop.f32.mrb[0].mxu0
    %605 = vdwg.mxu0
    %v607 = vrot.slane %v603, 4
    %v609 = vadd.f32 %v124, %v607
    %v610 = vtanh.pop %v609
    %v611 = vmul.f32 %v610, 0.5
    %v612 = vadd.f32 %v611, 0.5
    %v614 = vrot.slane %v523, 7
    %v616 = vmul.f32 %v612, %v614
    %618 = vrot.lane.b32.xlu0 %v610, 64
    %v619 = vpop.permute.xlu0 %618
    %v621 = vmul.f32 %v612, %v619
    %623 = vrot.lane.b32.xlu0 %v621, 32
    %v624 = vpop.permute.xlu0 %623
    %v626 = vadd.f32 %v616, %v624
    %v627 = vtanh.pop %v626
    %629 = vrot.lane.b32.xlu0 %v627, 64
    %v630 = vpop.permute.xlu0 %629
    %v632 = vmul.f32 %v612, %v630
    %v634 = vrot.slane %v632, 4
    %635 = vrot.lane.b32.xlu0 %v634, 32
    %v636 = vpop.permute.xlu0 %635
    %v637 = vsel %vm127, %v636, 0
    %639 = vmatprep.subr.mxu0 0.0
    %640 = vmatpush1.msra.mxu0 %v38
    %641 = vmatprep.subr.mxu0 0.0
    %642 = vmatpush1.msra.mxu0 %v39
    %643 = vmatprep.subr.mxu0 0.0
    %644 = vmatpush1.msra.mxu0 %v40
    %645 = vmatprep.subr.mxu0 0.0
    %646 = vmatpush1.msra.mxu0 %v41
    %647 = vmatprep.subr.mxu0 0.0
    %648 = vmatpush1.msra.mxu0 0.0
    %649 = vmatprep.subr.mxu0 0.0
    %650 = vmatpush1.msra.mxu0 0.0
    %651 = vmatprep.subr.mxu0 0.0
    %652 = vmatpush1.msra.mxu0 0.0
    %653 = vmatprep.subr.mxu0 0.0
    %654 = vmatpush1.msra.mxu0 0.0
    %655 = vmatprep.subr.mxu0 0.0
    %656 = vmatpush1.msra.mxu0 0.0
    %657 = vmatprep.subr.mxu0 0.0
    %658 = vmatpush1.msra.mxu0 0.0
    %659 = vmatprep.subr.mxu0 0.0
    %660 = vmatpush1.msra.mxu0 0.0
    %661 = vmatprep.subr.mxu0 0.0
    %662 = vmatpush1.msra.mxu0 0.0
    %663 = vmatprep.subr.mxu0 0.0
    %664 = vmatpush1.msra.mxu0 0.0
    %665 = vmatprep.subr.mxu0 0.0
    %666 = vmatpush1.msra.mxu0 0.0
    %667 = vmatprep.subr.mxu0 0.0
    %668 = vmatpush1.msra.mxu0 0.0
    %669 = vmatprep.subr.mxu0 0.0
    %670 = vmatpush1.msra.mxu0 0.0
    %671 = vmatprep.subr.mxu0 0.0
    %672 = vmatpush1.msra.mxu0 0.0
    %673 = vmatprep.subr.mxu0 0.0
    %674 = vmatpush1.msra.mxu0 0.0
    %675 = vmatprep.subr.mxu0 0.0
    %676 = vmatpush1.msra.mxu0 0.0
    %677 = vmatprep.subr.mxu0 0.0
    %678 = vmatpush1.msra.mxu0 0.0
    %679 = vmatprep.subr.mxu0 0.0
    %680 = vmatpush1.msra.mxu0 0.0
    %681 = vmatprep.subr.mxu0 0.0
    %682 = vmatpush1.msra.mxu0 0.0
    %683 = vmatprep.subr.mxu0 0.0
    %684 = vmatpush1.msra.mxu0 0.0
    %685 = vmatprep.subr.mxu0 0.0
    %686 = vmatpush1.msra.mxu0 0.0
    %687 = vmatprep.subr.mxu0 0.0
    %688 = vmatpush1.msra.mxu0 0.0
    %689 = vmatprep.subr.mxu0 0.0
    %690 = vmatpush1.msra.mxu0 0.0
    %691 = vmatprep.subr.mxu0 0.0
    %692 = vmatpush1.msra.mxu0 0.0
    %693 = vmatprep.subr.mxu0 0.0
    %694 = vmatpush1.msra.mxu0 0.0
    %695 = vmatprep.subr.mxu0 0.0
    %696 = vmatpush1.msra.mxu0 0.0
    %697 = vmatprep.subr.mxu0 0.0
    %698 = vmatpush1.msra.mxu0 0.0
    %699 = vmatprep.subr.mxu0 0.0
    %700 = vmatpush1.msra.mxu0 0.0
    %701 = vmatprep.subr.mxu0 0.0
    %702 = vmatpush1.msra.mxu0 0.0
    %703 = vmatprep.mubr.f32.mxu0 0.0
    %704 = vmatmul.mubr.f32.gmra.mrb[0].mxu0 %v637
    %v705 = vpop.f32.mrb[0].mxu0
    %v706 = vadd.f32 0.0, %v705
    %v707 = vpop.f32.mrb[0].mxu0
    %708 = vdwg.mxu0
    %v710 = vrot.slane %v706, 3
    %v712 = vadd.f32 %v124, %v710
    %v713 = vtanh.pop %v712
    %v714 = vmul.f32 %v713, 0.5
    %v715 = vadd.f32 %v714, 0.5
    %v717 = vrot.slane %v626, 7
    %v719 = vmul.f32 %v715, %v717
    %721 = vrot.lane.b32.xlu0 %v713, 64
    %v722 = vpop.permute.xlu0 %721
    %v724 = vmul.f32 %v715, %v722
    %726 = vrot.lane.b32.xlu0 %v724, 32
    %v727 = vpop.permute.xlu0 %726
    %v729 = vadd.f32 %v719, %v727
    %v730 = vtanh.pop %v729
    %732 = vrot.lane.b32.xlu0 %v730, 64
    %v733 = vpop.permute.xlu0 %732
    %v735 = vmul.f32 %v715, %v733
    %v737 = vrot.slane %v735, 5
    %738 = vrot.lane.b32.xlu0 %v737, 32
    %v739 = vpop.permute.xlu0 %738
    %v740 = vsel %vm127, %v739, 0
    %742 = vmatprep.subr.mxu0 0.0
    %743 = vmatpush1.msra.mxu0 %v38
    %744 = vmatprep.subr.mxu0 0.0
    %745 = vmatpush1.msra.mxu0 %v39
    %746 = vmatprep.subr.mxu0 0.0
    %747 = vmatpush1.msra.mxu0 %v40
    %748 = vmatprep.subr.mxu0 0.0
    %749 = vmatpush1.msra.mxu0 %v41
    %750 = vmatprep.subr.mxu0 0.0
    %751 = vmatpush1.msra.mxu0 0.0
    %752 = vmatprep.subr.mxu0 0.0
    %753 = vmatpush1.msra.mxu0 0.0
    %754 = vmatprep.subr.mxu0 0.0
    %755 = vmatpush1.msra.mxu0 0.0
    %756 = vmatprep.subr.mxu0 0.0
    %757 = vmatpush1.msra.mxu0 0.0
    %758 = vmatprep.subr.mxu0 0.0
    %759 = vmatpush1.msra.mxu0 0.0
    %760 = vmatprep.subr.mxu0 0.0
    %761 = vmatpush1.msra.mxu0 0.0
    %762 = vmatprep.subr.mxu0 0.0
    %763 = vmatpush1.msra.mxu0 0.0
    %764 = vmatprep.subr.mxu0 0.0
    %765 = vmatpush1.msra.mxu0 0.0
    %766 = vmatprep.subr.mxu0 0.0
    %767 = vmatpush1.msra.mxu0 0.0
    %768 = vmatprep.subr.mxu0 0.0
    %769 = vmatpush1.msra.mxu0 0.0
    %770 = vmatprep.subr.mxu0 0.0
    %771 = vmatpush1.msra.mxu0 0.0
    %772 = vmatprep.subr.mxu0 0.0
    %773 = vmatpush1.msra.mxu0 0.0
    %774 = vmatprep.subr.mxu0 0.0
    %775 = vmatpush1.msra.mxu0 0.0
    %776 = vmatprep.subr.mxu0 0.0
    %777 = vmatpush1.msra.mxu0 0.0
    %778 = vmatprep.subr.mxu0 0.0
    %779 = vmatpush1.msra.mxu0 0.0
    %780 = vmatprep.subr.mxu0 0.0
    %781 = vmatpush1.msra.mxu0 0.0
    %782 = vmatprep.subr.mxu0 0.0
    %783 = vmatpush1.msra.mxu0 0.0
    %784 = vmatprep.subr.mxu0 0.0
    %785 = vmatpush1.msra.mxu0 0.0
    %786 = vmatprep.subr.mxu0 0.0
    %787 = vmatpush1.msra.mxu0 0.0
    %788 = vmatprep.subr.mxu0 0.0
    %789 = vmatpush1.msra.mxu0 0.0
    %790 = vmatprep.subr.mxu0 0.0
    %791 = vmatpush1.msra.mxu0 0.0
    %792 = vmatprep.subr.mxu0 0.0
    %793 = vmatpush1.msra.mxu0 0.0
    %794 = vmatprep.subr.mxu0 0.0
    %795 = vmatpush1.msra.mxu0 0.0
    %796 = vmatprep.subr.mxu0 0.0
    %797 = vmatpush1.msra.mxu0 0.0
    %798 = vmatprep.subr.mxu0 0.0
    %799 = vmatpush1.msra.mxu0 0.0
    %800 = vmatprep.subr.mxu0 0.0
    %801 = vmatpush1.msra.mxu0 0.0
    %802 = vmatprep.subr.mxu0 0.0
    %803 = vmatpush1.msra.mxu0 0.0
    %804 = vmatprep.subr.mxu0 0.0
    %805 = vmatpush1.msra.mxu0 0.0
    %806 = vmatprep.mubr.f32.mxu0 0.0
    %807 = vmatmul.mubr.f32.gmra.mrb[0].mxu0 %v740
    %v808 = vpop.f32.mrb[0].mxu0
    %v809 = vadd.f32 0.0, %v808
    %v810 = vpop.f32.mrb[0].mxu0
    %811 = vdwg.mxu0
    %v813 = vrot.slane %v809, 2
    %v815 = vadd.f32 %v124, %v813
    %v816 = vtanh.pop %v815
    %v817 = vmul.f32 %v816, 0.5
    %v818 = vadd.f32 %v817, 0.5
    %v820 = vrot.slane %v729, 7
    %v822 = vmul.f32 %v818, %v820
    %824 = vrot.lane.b32.xlu0 %v816, 64
    %v825 = vpop.permute.xlu0 %824
    %v827 = vmul.f32 %v818, %v825
    %829 = vrot.lane.b32.xlu0 %v827, 32
    %v830 = vpop.permute.xlu0 %829
    %v832 = vadd.f32 %v822, %v830
    %v833 = vtanh.pop %v832
    %835 = vrot.lane.b32.xlu0 %v833, 64
    %v836 = vpop.permute.xlu0 %835
    %v838 = vmul.f32 %v818, %v836
    %v840 = vrot.slane %v838, 6
    %841 = vrot.lane.b32.xlu0 %v840, 32
    %v842 = vpop.permute.xlu0 %841
    %v843 = vsel %vm127, %v842, 0
    %845 = vmatprep.subr.mxu0 0.0
    %846 = vmatpush1.msra.mxu0 %v38
    %847 = vmatprep.subr.mxu0 0.0
    %848 = vmatpush1.msra.mxu0 %v39
    %849 = vmatprep.subr.mxu0 0.0
    %850 = vmatpush1.msra.mxu0 %v40
    %851 = vmatprep.subr.mxu0 0.0
    %852 = vmatpush1.msra.mxu0 %v41
    %853 = vmatprep.subr.mxu0 0.0
    %854 = vmatpush1.msra.mxu0 0.0
    %855 = vmatprep.subr.mxu0 0.0
    %856 = vmatpush1.msra.mxu0 0.0
    %857 = vmatprep.subr.mxu0 0.0
    %858 = vmatpush1.msra.mxu0 0.0
    %859 = vmatprep.subr.mxu0 0.0
    %860 = vmatpush1.msra.mxu0 0.0
    %861 = vmatprep.subr.mxu0 0.0
    %862 = vmatpush1.msra.mxu0 0.0
    %863 = vmatprep.subr.mxu0 0.0
    %864 = vmatpush1.msra.mxu0 0.0
    %865 = vmatprep.subr.mxu0 0.0
    %866 = vmatpush1.msra.mxu0 0.0
    %867 = vmatprep.subr.mxu0 0.0
    %868 = vmatpush1.msra.mxu0 0.0
    %869 = vmatprep.subr.mxu0 0.0
    %870 = vmatpush1.msra.mxu0 0.0
    %871 = vmatprep.subr.mxu0 0.0
    %872 = vmatpush1.msra.mxu0 0.0
    %873 = vmatprep.subr.mxu0 0.0
    %874 = vmatpush1.msra.mxu0 0.0
    %875 = vmatprep.subr.mxu0 0.0
    %876 = vmatpush1.msra.mxu0 0.0
    %877 = vmatprep.subr.mxu0 0.0
    %878 = vmatpush1.msra.mxu0 0.0
    %879 = vmatprep.subr.mxu0 0.0
    %880 = vmatpush1.msra.mxu0 0.0
    %881 = vmatprep.subr.mxu0 0.0
    %882 = vmatpush1.msra.mxu0 0.0
    %883 = vmatprep.subr.mxu0 0.0
    %884 = vmatpush1.msra.mxu0 0.0
    %885 = vmatprep.subr.mxu0 0.0
    %886 = vmatpush1.msra.mxu0 0.0
    %887 = vmatprep.subr.mxu0 0.0
    %888 = vmatpush1.msra.mxu0 0.0
    %889 = vmatprep.subr.mxu0 0.0
    %890 = vmatpush1.msra.mxu0 0.0
    %891 = vmatprep.subr.mxu0 0.0
    %892 = vmatpush1.msra.mxu0 0.0
    %893 = vmatprep.subr.mxu0 0.0
    %894 = vmatpush1.msra.mxu0 0.0
    %895 = vmatprep.subr.mxu0 0.0
    %896 = vmatpush1.msra.mxu0 0.0
    %897 = vmatprep.subr.mxu0 0.0
    %898 = vmatpush1.msra.mxu0 0.0
    %899 = vmatprep.subr.mxu0 0.0
    %900 = vmatpush1.msra.mxu0 0.0
    %901 = vmatprep.subr.mxu0 0.0
    %902 = vmatpush1.msra.mxu0 0.0
    %903 = vmatprep.subr.mxu0 0.0
    %904 = vmatpush1.msra.mxu0 0.0
    %905 = vmatprep.subr.mxu0 0.0
    %906 = vmatpush1.msra.mxu0 0.0
    %907 = vmatprep.subr.mxu0 0.0
    %908 = vmatpush1.msra.mxu0 0.0
    %909 = vmatprep.mubr.f32.mxu0 0.0
    %910 = vmatmul.mubr.f32.gmra.mrb[0].mxu0 %v843
    %v911 = vpop.f32.mrb[0].mxu0
    %v912 = vadd.f32 0.0, %v911
    %v913 = vpop.f32.mrb[0].mxu0
    %914 = vdwg.mxu0
    %v916 = vrot.slane %v912, 1
    %v918 = vadd.f32 %v124, %v916
    %v919 = vtanh.pop %v918
    %v920 = vmul.f32 %v919, 0.5
    %v921 = vadd.f32 %v920, 0.5
    %v923 = vrot.slane %v832, 7
    %v925 = vmul.f32 %v921, %v923
    %927 = vrot.lane.b32.xlu0 %v919, 64
    %v928 = vpop.permute.xlu0 %927
    %v930 = vmul.f32 %v921, %v928
    %932 = vrot.lane.b32.xlu0 %v930, 32
    %v933 = vpop.permute.xlu0 %932
    %v935 = vadd.f32 %v925, %v933
    %v936 = vtanh.pop %v935
    %938 = vrot.lane.b32.xlu0 %v936, 64
    %v939 = vpop.permute.xlu0 %938
    %v941 = vmul.f32 %v921, %v939
    %vm942 = vcmask 1040384
    %v943 = vsel %vm942, %v221, %v323
    %vm944 = vcmask 1041408
    %v945 = vsel %vm944, %v943, %v426
    %vm946 = vcmask 1042432
    %v947 = vsel %vm946, %v945, %v529
    %vm948 = vcmask 1043456
    %v949 = vsel %vm948, %v947, %v632
    %vm950 = vcmask 1044480
    %v951 = vsel %vm950, %v949, %v735
    %vm952 = vcmask 1045504
    %v953 = vsel %vm952, %v951, %v838
    %vm954 = vcmask 1046528
    %v955 = vsel %vm954, %v953, %v941
    %v956 = vlaneseq
    %v957 = vshrl.u32 %v956, 7
    %v958 = vsub.s32 0, %v957
    %v959 = vrot.slane %v43, %v958
    %961 = vrot.lane.b32.xlu0 %v955, 32
    %v962 = vpop.permute.xlu0 %961
    %v963 = vsel %vm127, %v962, 0
    %965 = vmatprep.subr.mxu0 0.0
    %966 = vmatpush1.msra.mxu0 %v44
    %967 = vmatprep.subr.mxu0 0.0
    %968 = vmatpush1.msra.mxu0 %v45
    %969 = vmatprep.subr.mxu0 0.0
    %970 = vmatpush1.msra.mxu0 %v46
    %971 = vmatprep.subr.mxu0 0.0
    %972 = vmatpush1.msra.mxu0 %v47
    %973 = vmatprep.subr.mxu0 0.0
    %974 = vmatpush1.msra.mxu0 0.0
    %975 = vmatprep.subr.mxu0 0.0
    %976 = vmatpush1.msra.mxu0 0.0
    %977 = vmatprep.subr.mxu0 0.0
    %978 = vmatpush1.msra.mxu0 0.0
    %979 = vmatprep.subr.mxu0 0.0
    %980 = vmatpush1.msra.mxu0 0.0
    %981 = vmatprep.subr.mxu0 0.0
    %982 = vmatpush1.msra.mxu0 0.0
    %983 = vmatprep.subr.mxu0 0.0
    %984 = vmatpush1.msra.mxu0 0.0
    %985 = vmatprep.subr.mxu0 0.0
    %986 = vmatpush1.msra.mxu0 0.0
    %987 = vmatprep.subr.mxu0 0.0
    %988 = vmatpush1.msra.mxu0 0.0
    %989 = vmatprep.subr.mxu0 0.0
    %990 = vmatpush1.msra.mxu0 0.0
    %991 = vmatprep.subr.mxu0 0.0
    %992 = vmatpush1.msra.mxu0 0.0
    %993 = vmatprep.subr.mxu0 0.0
    %994 = vmatpush1.msra.mxu0 0.0
    %995 = vmatprep.subr.mxu0 0.0
    %996 = vmatpush1.msra.mxu0 0.0
    %997 = vmatprep.subr.mxu0 0.0
    %998 = vmatpush1.msra.mxu0 0.0
    %999 = vmatprep.subr.mxu0 0.0
    %1000 = vmatpush1.msra.mxu0 0.0
    %1001 = vmatprep.subr.mxu0 0.0
    %1002 = vmatpush1.msra.mxu0 0.0
    %1003 = vmatprep.subr.mxu0 0.0
    %1004 = vmatpush1.msra.mxu0 0.0
    %1005 = vmatprep.subr.mxu0 0.0
    %1006 = vmatpush1.msra.mxu0 0.0
    %1007 = vmatprep.subr.mxu0 0.0
    %1008 = vmatpush1.msra.mxu0 0.0
    %1009 = vmatprep.subr.mxu0 0.0
    %1010 = vmatpush1.msra.mxu0 0.0
    %1011 = vmatprep.subr.mxu0 0.0
    %1012 = vmatpush1.msra.mxu0 0.0
    %1013 = vmatprep.subr.mxu0 0.0
    %1014 = vmatpush1.msra.mxu0 0.0
    %1015 = vmatprep.subr.mxu0 0.0
    %1016 = vmatpush1.msra.mxu0 0.0
    %1017 = vmatprep.subr.mxu0 0.0
    %1018 = vmatpush1.msra.mxu0 0.0
    %1019 = vmatprep.subr.mxu0 0.0
    %1020 = vmatpush1.msra.mxu0 0.0
    %1021 = vmatprep.subr.mxu0 0.0
    %1022 = vmatpush1.msra.mxu0 0.0
    %1023 = vmatprep.subr.mxu0 0.0
    %1024 = vmatpush1.msra.mxu0 0.0
    %1025 = vmatprep.subr.mxu0 0.0
    %1026 = vmatpush1.msra.mxu0 0.0
    %1027 = vmatprep.subr.mxu0 0.0
    %1028 = vmatpush1.msra.mxu0 0.0
    %1029 = vmatprep.mubr.f32.mxu0 0.0
    %1030 = vmatmul.mubr.f32.gmra.mrb[0].mxu0 %v963
    %v1031 = vpop.f32.mrb[0].mxu0
    %v1032 = vadd.f32 %v959, %v1031
    %v1033 = vpop.f32.mrb[0].mxu0
    %1034 = vdwg.mxu0
    %v1035 = vrot.slane %v1032, 4
    %v1036 = vmax.f32 %v1032, %v1035
    %v1037 = vrot.slane %v1036, 2
    %v1038 = vmax.f32 %v1036, %v1037
    %v1039 = vrot.slane %v1038, 1
    %v1040 = vmax.f32 %v1038, %v1039
    %v1041 = vsub.f32 %v1032, %v1040
    %v1042 = vmul.f32 %v1041, 1.442695
    %v1043 = vpow.pop %v1042
    %v1044 = vrot.slane %v1043, 4
    %v1045 = vadd.f32 %v1043, %v1044
    %v1046 = vrot.slane %v1045, 2
    %v1047 = vadd.f32 %v1045, %v1046
    %v1048 = vrot.slane %v1047, 1
    %v1049 = vadd.f32 %v1047, %v1048
    %v1050 = vrcp.pop %v1049
    %v1051 = vmul.f32 %v1043, %v1050
    %v1053 = vrot.slane %v941, 7
    %v1056 = vrot.slane %v935, 6
    %1057 = vrot.lane.b32.xlu0 %v1056, 64
    %v1058 = vpop.permute.xlu0 %1057
    %v1060 = vsel %vm942, %v1053, %v1058
    %1062 = vrot.lane.b32.xlu0 %v1060, 32
    %v1063 = vpop.permute.xlu0 %1062
    %v1065 = vsel %vm127, %v1063, 0.0
    %1066 = vst [vmem:[%s2] sm:$0xff] %v1051
    %1067 = vst [vmem:[%s2 + $0x8] sm:$0x3] %v1065
    // Predicated region
    $region18: #{forward.1} parent=1 // pred_check
      _
    $region19: #{forward.1} parent=1 // pred_check_branch
      %1069 = sbr.rel (0) target = $region21
    $region20: #{forward.1} parent=1 // pred_region
      _
    $region21: #{forward.1} parent=1 // pred_fallthru
      _
    // Predicated region
    $region22: #{forward.1} parent=1 // pred_check
      _
    $region23: #{forward.1} parent=1 // pred_check_branch
      %1071 = sbr.rel (0) target = $region25
    $region24: #{forward.1} parent=1 // pred_region
      _
    $region25: #{forward.1} parent=1 // pred_fallthru
      _
    %1072 = vsyncpa [#allocation3], 1
    %1073 = vsyncpa [#allocation5], 1

</llo_original>
